<compile_context>
chip_gen: v6e
topology: v6e:2x2x1
jax: 0.10.0
libtpu: 0.0.40
codegen_flags: <defaults>
</compile_context>

<pallas_src>
from typing import NamedTuple

import jax
import jax.numpy as jnp
from jax import lax
from jax.experimental import pallas as pl
from jax.experimental.pallas import tpu as pltpu


class ModelOutput(NamedTuple):
    depths: jax.Array              # (B, F, H, W)
    surfaces: jax.Array            # (B, F, H, W, 3)
    intrinsics: jax.Array          # (B, F, 3, 3)
    extrinsics: jax.Array          # (B, F, 4, 4)
    backbone_weights: jax.Array    # (B, F-1, H, W)


# Deterministic in-script "parameter" for the intrinsics module (normalized focal).
# TODO(synk): flowmap's softmin-over-flow intrinsics estimation (self.intrinsics)
# is not replicated; a deterministic fixed-focal pinhole is used instead.
FOCAL_NORMALIZED = 0.8


def _vmem_limit_bytes(per_step_bytes):
    """Per-generation VMEM request: real footprint + headroom, <= 3/4 physical."""
    cap = 64 * 1024 * 1024          # conservative fallback (v7x per-TC VMEM)
    try:
        cap = int(pltpu.get_tpu_info().vmem_capacity_bytes)
    except Exception:
        pass
    want = int(per_step_bytes) + (4 << 20)
    return int(min(max(want, 32 << 20), (3 * cap) // 4))


def _pixel_grid(height, width):
    """Normalized pixel centers, flowmap sample_image_grid convention. (2, HW)."""
    xs = (jnp.arange(width, dtype=jnp.float32) + 0.5) / width
    ys = (jnp.arange(height, dtype=jnp.float32) + 0.5) / height
    x = jnp.broadcast_to(xs[None, :], (height, width)).reshape(1, height * width)
    y = jnp.broadcast_to(ys[:, None], (height, width)).reshape(1, height * width)
    return jnp.concatenate([x, y], axis=0)


# --------------------------------------------------------------------------
# Fused kernel: unproject + weighted Procrustes moments.
# Grid = (B, F); B "parallel" (megacore), F "arbitrary" (carry + revisit).
# carry_ref: (2, 4, HW) ping-pong homogeneous frames [x, y, z, 1].
# --------------------------------------------------------------------------
def _fused_kernel(xy_ref, kinv_ref, depth_ref, w_ref, surf_ref, mom_ref, carry_ref):
    f = pl.program_id(1)
    slot = f & 1

    x = xy_ref[0:1, :]                     # (1, HW)
    y = xy_ref[1:2, :]                     # (1, HW)
    d = depth_ref[0, 0]                    # (1, HW)

    kinv = kinv_ref[0, 0]                  # (3, 3)
    kx = kinv[:, 0:1]                      # (3, 1)
    ky = kinv[:, 1:2]
    kz = kinv[:, 2:3]

    # surface = depth * K^{-1} [x, y, 1] -- all three channels in one (3, HW)
    # broadcasted expression (3/8 sublane use instead of three 1/8 passes).
    cur3 = (kx * x + ky * y + kz) * d      # (3, HW)

    # Single lane-dense store of the surfaces block (written to HBM once).
    surf_ref[0, 0] = cur3

    # Write frame f straight into its ping-pong slot (no end-of-step copy).
    carry_ref[slot, 0:3, :] = cur3
    carry_ref[slot, 3:4, :] = jnp.ones_like(d)

    # Pair 0's output block is selected at f == 0 but only meaningfully
    # written at f == 1 (same block index, consecutive revisit).  Zero it
    # defensively so an uninitialized block can never be written back.
    @pl.when(f == 0)
    def _zero_pair0():
        mom_ref[0, 0] = jnp.zeros((4, 4), jnp.float32)

    # Moments for pair p = f - 1:
    #   mom = (prev4 * w) @ cur4^T, homogeneous rows = [x, y, z, 1]
    #   -> [[sum w a b^T, sum w a], [sum w b, sum w]] in one MXU push.
    @pl.when(f > 0)
    def _moments():
        prev4 = carry_ref[1 - slot]        # (4, HW)
        wa4 = prev4 * w_ref[0, 0]          # (4, HW), weight of pair f-1
        cur4 = carry_ref[slot]             # (4, HW), fed from scratch (no surf reload)
        mom_ref[0, 0] = lax.dot_general(
            wa4, cur4, (((1,), (1,)), ((), ())),
            preferred_element_type=jnp.float32)


def fused_unproject_moments(depths, inv_k, weights, height, width):
    B, F = depths.shape[:2]
    P = F - 1
    HW = height * width
    depths4 = depths.reshape(B, F, 1, HW)          # lane-dense trailing axis
    weights4 = weights.reshape(B, P, 1, HW)
    xy = _pixel_grid(height, width)                # (2, HW)

    # per-step footprint: 2x(xy) + 2x(depth) + 2x(weights) + 2x(surf) + carry
    per_step = 4 * HW * (2 * 2 + 2 * 1 + 2 * 1 + 2 * 3 + 2 * 4)

    surf_flat, moments = pl.pallas_call(
        _fused_kernel,
        out_shape=(
            jax.ShapeDtypeStruct((B, F, 3, HW), jnp.float32),
            jax.ShapeDtypeStruct((B, P, 4, 4), jnp.float32),
        ),
        grid=(B, F),
        in_specs=[
            pl.BlockSpec((2, HW), lambda b, f: (0, 0)),                    # xy grid
            pl.BlockSpec((1, 1, 3, 3), lambda b, f: (b, f, 0, 0)),         # K^{-1}
            pl.BlockSpec((1, 1, 1, HW), lambda b, f: (b, f, 0, 0)),        # depths
            pl.BlockSpec((1, 1, 1, HW),
                         lambda b, f: (b, jnp.maximum(f - 1, 0), 0, 0)),   # weights[p]
        ],
        out_specs=(
            pl.BlockSpec((1, 1, 3, HW), lambda b, f: (b, f, 0, 0)),        # surfaces
            pl.BlockSpec((1, 1, 4, 4),
                         lambda b, f: (b, jnp.maximum(f - 1, 0), 0, 0)),   # moments
        ),
        scratch_shapes=[
            pltpu.VMEM((2, 4, HW), jnp.float32),   # ping-pong homogeneous carry
        ],
        compiler_params=pltpu.CompilerParams(
            dimension_semantics=("parallel", "arbitrary"),
            vmem_limit_bytes=_vmem_limit_bytes(per_step)),
    )(xy, inv_k, depths4, weights4)
    return surf_flat, moments


# --------------------------------------------------------------------------
# Moments-only kernel (used when pointmaps/surfaces are supplied externally).
# Each frame is read from HBM exactly once; same ping-pong + single-dot form.
# --------------------------------------------------------------------------
def _moments_kernel(surf_ref, w_ref, mom_ref, carry_ref):
    f = pl.program_id(1)
    slot = f & 1

    cur3 = surf_ref[0, 0]                  # (3, HW)
    carry_ref[slot, 0:3, :] = cur3
    carry_ref[slot, 3:4, :] = jnp.ones_like(w_ref[0, 0])

    @pl.when(f == 0)
    def _zero_pair0():
        mom_ref[0, 0] = jnp.zeros((4, 4), jnp.float32)

    @pl.when(f > 0)
    def _moments():
        prev4 = carry_ref[1 - slot]
        wa4 = prev4 * w_ref[0, 0]
        cur4 = carry_ref[slot]
        mom_ref[0, 0] = lax.dot_general(
            wa4, cur4, (((1,), (1,)), ((), ())),
            preferred_element_type=jnp.float32)


def moments_pallas(surf_flat, weights, height, width):
    B, F = surf_flat.shape[:2]
    P = F - 1
    HW = height * width
    weights4 = weights.reshape(B, P, 1, HW)
    per_step = 4 * HW * (2 * 3 + 2 * 1 + 2 * 4)
    return pl.pallas_call(
        _moments_kernel,
        out_shape=jax.ShapeDtypeStruct((B, P, 4, 4), jnp.float32),
        grid=(B, F),
        in_specs=[
            pl.BlockSpec((1, 1, 3, HW), lambda b, f: (b, f, 0, 0)),
            pl.BlockSpec((1, 1, 1, HW),
                         lambda b, f: (b, jnp.maximum(f - 1, 0), 0, 0)),
        ],
        out_specs=pl.BlockSpec((1, 1, 4, 4),
                               lambda b, f: (b, jnp.maximum(f - 1, 0), 0, 0)),
        scratch_shapes=[pltpu.VMEM((2, 4, HW), jnp.float32)],
        compiler_params=pltpu.CompilerParams(
            dimension_semantics=("parallel", "arbitrary"),
            vmem_limit_bytes=_vmem_limit_bytes(per_step)),
    )(surf_flat, weights4)


# --------------------------------------------------------------------------
# Plain-JAX glue: Procrustes solve (SVD) + pose composition.
# --------------------------------------------------------------------------
def extrinsics_from_moments(moments):
    # TODO(synk): flowmap warps the target frame via optical flow (grid_sample
    # gather) before alignment; pixel-aligned correspondence is assumed here.
    B, P = moments.shape[:2]
    cov = moments[..., :3, :3]
    swa = moments[..., :3, 3]
    swb = moments[..., 3, :3]
    sw = moments[..., 3, 3]                               # (B, P)

    ma = swa / sw[..., None]
    mb = swb / sw[..., None]
    Hm = cov / sw[..., None, None] - ma[..., :, None] * mb[..., None, :]

    U, _, Vt = jnp.linalg.svd(Hm)
    V = jnp.swapaxes(Vt, -1, -2)
    Ut = jnp.swapaxes(U, -1, -2)
    det = jnp.linalg.det(jnp.matmul(V, Ut))
    d3 = jnp.stack([jnp.ones_like(det), jnp.ones_like(det), det], axis=-1)
    R = jnp.matmul(V * d3[..., None, :], Ut)              # (B, P, 3, 3)
    t = mb - jnp.einsum('...ij,...j->...i', R, ma)        # (B, P, 3)

    top = jnp.concatenate([R, t[..., :, None]], axis=-1)  # (B, P, 3, 4)
    bottom = jnp.broadcast_to(
        jnp.array([0.0, 0.0, 0.0, 1.0], jnp.float32), (B, P, 1, 4))
    T_rel = jnp.concatenate([top, bottom], axis=-2)       # cam f -> cam f+1

    # camera-to-world extrinsics: frame 0 = identity, then compose.
    T_rel_inv = jnp.linalg.inv(T_rel)
    E = [jnp.broadcast_to(jnp.eye(4, dtype=jnp.float32), (B, 4, 4))]
    for p in range(P):
        E.append(jnp.matmul(E[-1], T_rel_inv[:, p]))
    return jnp.stack(E, axis=1)                           # (B, F, 4, 4)


# --------------------------------------------------------------------------
# FlowmapWrapper.forward equivalent.
# --------------------------------------------------------------------------
def flowmap_wrapper_forward(videos, flows, depths, correspondence_weights,
                            global_step=0, surfaces=None, intrinsics=None,
                            use_correspondence_weights=True):
    assert not (surfaces is not None and intrinsics is None), \
        "No intrinsics provided along with pointmaps in Flowmap loss."
    B, F, _, H, W = videos.shape

    weights = correspondence_weights
    if not use_correspondence_weights:
        weights = jnp.ones_like(correspondence_weights)
    weights = weights.astype(jnp.float32)

    if intrinsics is None:
        K = jnp.array([[FOCAL_NORMALIZED, 0.0, 0.5],
                       [0.0, FOCAL_NORMALIZED, 0.5],
                       [0.0, 0.0, 1.0]], jnp.float32)
        intrinsics = jnp.broadcast_to(K, (B, F, 3, 3))

    if surfaces is None:
        inv_k = jnp.linalg.inv(intrinsics).astype(jnp.float32)
        surf_flat, moments = fused_unproject_moments(
            depths.astype(jnp.float32), inv_k, weights, H, W)
        # Single layout pass to the PyTorch "batch frame height width 3"
        # convention; the kernel itself emits a lane-dense channel-first slab
        # (consumers that accept channel-first can skip this transpose).
        surfaces = jnp.transpose(surf_flat.reshape(B, F, 3, H, W),
                                 (0, 1, 3, 4, 2))
    else:
        surf_flat = jnp.transpose(surfaces, (0, 1, 4, 2, 3)
                                  ).reshape(B, F, 3, H * W).astype(jnp.float32)
        moments = moments_pallas(surf_flat, weights, H, W)

    extrinsics = extrinsics_from_moments(moments)

    return ModelOutput(depths, surfaces, intrinsics, extrinsics, weights)


if __name__ == "__main__":
    key = jax.random.PRNGKey(0)
    B, F, H, W = 2, 4, 16, 16
    P = F - 1
    k1, k2, k3, k4 = jax.random.split(key, 4)

    videos = jax.random.uniform(k1, (B, F, 3, H, W), jnp.float32)
    depths = jax.random.uniform(k2, (B, F, H, W), jnp.float32,
                                minval=0.5, maxval=2.0)
    correspondence_weights = jax.random.uniform(k3, (B, P, H, W), jnp.float32,
                                                minval=0.1, maxval=1.0)
    # flows are only consumed by the (not replicated) flow-based submodules.
    flows = jax.random.uniform(k4, (B, P, H, W, 2), jnp.float32) * 0.01

    out = flowmap_wrapper_forward(videos, flows, depths, correspondence_weights,
                                  global_step=0, surfaces=None, intrinsics=None,
                                  use_correspondence_weights=True)
    out = jax.block_until_ready(out)

    assert out.depths.shape == (B, F, H, W)
    assert out.surfaces.shape == (B, F, H, W, 3)
    assert out.intrinsics.shape == (B, F, 3, 3)
    assert out.extrinsics.shape == (B, F, 4, 4)
    assert out.backbone_weights.shape == (B, P, H, W)
    assert bool(jnp.all(jnp.isfinite(out.surfaces)))
    assert bool(jnp.all(jnp.isfinite(out.extrinsics)))

    print("KERNEL_OK")
</pallas_src>

<mosaic_0001>
module attributes {stable_mosaic.version = 11 : i64} {
  func.func @_fused_kernel(%arg0: i32, %arg1: i32, %arg2: memref<2x256xf32, #tpu.memory_space<vmem>>, %arg3: memref<1x1x3x3xf32, #tpu.memory_space<vmem>>, %arg4: memref<1x1x1x256xf32, #tpu.memory_space<vmem>>, %arg5: memref<1x1x1x256xf32, #tpu.memory_space<vmem>>, %arg6: memref<1x1x3x256xf32, #tpu.memory_space<vmem>>, %arg7: memref<1x1x4x4xf32, #tpu.memory_space<vmem>>, %arg8: memref<2x4x256xf32, #tpu.memory_space<vmem>>) attributes {dimension_semantics = [#tpu.dimension_semantics<parallel>, #tpu.dimension_semantics<arbitrary>], iteration_bounds = array<i64: 2, 4>, scalar_prefetch = 0 : i64, scratch_operands = 1 : i64, tpu.core_type = #tpu.core_type<tc>, window_params = [{pipeline_mode = #tpu.pipeline_mode<synchronous>, transform_indices = @transform_0, window_bounds = array<i64: 2, 256>}, {transform_indices = @transform_1, window_bounds = array<i64: 1, 1, 3, 3>}, {transform_indices = @transform_2, window_bounds = array<i64: 1, 1, 1, 256>}, {transform_indices = @transform_3, window_bounds = array<i64: 1, 1, 1, 256>}, {transform_indices = @transform_4, window_bounds = array<i64: 1, 1, 3, 256>}, {transform_indices = @transform_5, window_bounds = array<i64: 1, 1, 4, 4>}]} {
    %c1_i32 = arith.constant 1 : i32
    %0 = arith.andi %arg1, %c1_i32 : i32
    %c0 = arith.constant 0 : index
    %c0_0 = arith.constant 0 : index
    %1 = vector.load %arg2[%c0, %c0_0] : memref<2x256xf32, #tpu.memory_space<vmem>>, vector<1x256xf32>
    %c1 = arith.constant 1 : index
    %c0_1 = arith.constant 0 : index
    %2 = vector.load %arg2[%c1, %c0_1] : memref<2x256xf32, #tpu.memory_space<vmem>>, vector<1x256xf32>
    %c0_2 = arith.constant 0 : index
    %c0_3 = arith.constant 0 : index
    %c0_4 = arith.constant 0 : index
    %c0_5 = arith.constant 0 : index
    %3 = vector.load %arg4[%c0_2, %c0_3, %c0_4, %c0_5] : memref<1x1x1x256xf32, #tpu.memory_space<vmem>>, vector<1x1x1x256xf32>
    %4 = vector.shape_cast %3 : vector<1x1x1x256xf32> to vector<1x256xf32>
    %c0_6 = arith.constant 0 : index
    %c0_7 = arith.constant 0 : index
    %c0_8 = arith.constant 0 : index
    %c0_9 = arith.constant 0 : index
    %5 = vector.load %arg3[%c0_6, %c0_7, %c0_8, %c0_9] : memref<1x1x3x3xf32, #tpu.memory_space<vmem>>, vector<1x1x3x3xf32>
    %6 = vector.shape_cast %5 : vector<1x1x3x3xf32> to vector<3x3xf32>
    %7 = vector.extract_strided_slice %6 {offsets = [0, 0], sizes = [3, 1], strides = [1, 1]} : vector<3x3xf32> to vector<3x1xf32>
    %8 = vector.extract_strided_slice %6 {offsets = [0, 1], sizes = [3, 1], strides = [1, 1]} : vector<3x3xf32> to vector<3x1xf32>
    %9 = vector.extract_strided_slice %6 {offsets = [0, 2], sizes = [3, 1], strides = [1, 1]} : vector<3x3xf32> to vector<3x1xf32>
    %10 = vector.broadcast %7 : vector<3x1xf32> to vector<3x256xf32>
    %11 = vector.broadcast %1 : vector<1x256xf32> to vector<3x256xf32>
    %12 = arith.mulf %10, %11 : vector<3x256xf32>
    %13 = vector.broadcast %8 : vector<3x1xf32> to vector<3x256xf32>
    %14 = vector.broadcast %2 : vector<1x256xf32> to vector<3x256xf32>
    %15 = arith.mulf %13, %14 : vector<3x256xf32>
    %16 = arith.addf %12, %15 : vector<3x256xf32>
    %17 = vector.broadcast %9 : vector<3x1xf32> to vector<3x256xf32>
    %18 = arith.addf %16, %17 : vector<3x256xf32>
    %19 = vector.broadcast %4 : vector<1x256xf32> to vector<3x256xf32>
    %20 = arith.mulf %18, %19 : vector<3x256xf32>
    %c0_10 = arith.constant 0 : index
    %c0_11 = arith.constant 0 : index
    %c0_12 = arith.constant 0 : index
    %c0_13 = arith.constant 0 : index
    %21 = vector.load %arg6[%c0_10, %c0_11, %c0_12, %c0_13] : memref<1x1x3x256xf32, #tpu.memory_space<vmem>>, vector<1x1x3x256xf32>
    %22 = vector.shape_cast %21 : vector<1x1x3x256xf32> to vector<3x256xf32>
    %23 = vector.shape_cast %20 : vector<3x256xf32> to vector<1x1x3x256xf32>
    tpu.vector_store %arg6[%c0_10, %c0_11, %c0_12, %c0_13], %23 {strides = array<i32>} : memref<1x1x3x256xf32, #tpu.memory_space<vmem>>, vector<1x1x3x256xf32>,
    %24 = arith.index_cast %0 : i32 to index
    %c0_14 = arith.constant 0 : index
    %c0_15 = arith.constant 0 : index
    %25 = vector.load %arg8[%24, %c0_14, %c0_15] : memref<2x4x256xf32, #tpu.memory_space<vmem>>, vector<1x3x256xf32>
    %26 = vector.shape_cast %25 : vector<1x3x256xf32> to vector<3x256xf32>
    %27 = vector.shape_cast %20 : vector<3x256xf32> to vector<1x3x256xf32>
    tpu.vector_store %arg8[%24, %c0_14, %c0_15], %27 {strides = array<i32>} : memref<2x4x256xf32, #tpu.memory_space<vmem>>, vector<1x3x256xf32>,
    %cst = arith.constant 1.000000e+00 : f32
    %28 = vector.broadcast %cst : f32 to vector<1x256xf32>
    %29 = arith.index_cast %0 : i32 to index
    %c3 = arith.constant 3 : index
    %c0_16 = arith.constant 0 : index
    %30 = vector.load %arg8[%29, %c3, %c0_16] : memref<2x4x256xf32, #tpu.memory_space<vmem>>, vector<1x1x256xf32>
    %31 = vector.shape_cast %30 : vector<1x1x256xf32> to vector<1x256xf32>
    %32 = vector.shape_cast %28 : vector<1x256xf32> to vector<1x1x256xf32>
    tpu.vector_store %arg8[%29, %c3, %c0_16], %32 {strides = array<i32>} : memref<2x4x256xf32, #tpu.memory_space<vmem>>, vector<1x1x256xf32>,
    %c0_i32 = arith.constant 0 : i32
    %33 = arith.cmpi eq, %arg1, %c0_i32 : i32
    %34 = arith.extui %33 : i1 to i32
    %c0_i32_17 = arith.constant 0 : i32
    %35 = arith.cmpi ne, %34, %c0_i32_17 : i32
    scf.if %35 {
      %cst_20 = arith.constant 0.000000e+00 : f32
      %39 = vector.broadcast %cst_20 : f32 to vector<4x4xf32>
      %c0_21 = arith.constant 0 : index
      %c0_22 = arith.constant 0 : index
      %c0_23 = arith.constant 0 : index
      %c0_24 = arith.constant 0 : index
      %40 = vector.load %arg7[%c0_21, %c0_22, %c0_23, %c0_24] : memref<1x1x4x4xf32, #tpu.memory_space<vmem>>, vector<1x1x4x4xf32>
      %41 = vector.shape_cast %40 : vector<1x1x4x4xf32> to vector<4x4xf32>
      %42 = vector.shape_cast %39 : vector<4x4xf32> to vector<1x1x4x4xf32>
      tpu.vector_store %arg7[%c0_21, %c0_22, %c0_23, %c0_24], %42 {strides = array<i32>} : memref<1x1x4x4xf32, #tpu.memory_space<vmem>>, vector<1x1x4x4xf32>,
    } else {
    }
    %c0_i32_18 = arith.constant 0 : i32
    %36 = arith.cmpi sgt, %arg1, %c0_i32_18 : i32
    %37 = arith.extui %36 : i1 to i32
    %c0_i32_19 = arith.constant 0 : i32
    %38 = arith.cmpi ne, %37, %c0_i32_19 : i32
    scf.if %38 {
      %c1_i32_20 = arith.constant 1 : i32
      %39 = arith.subi %c1_i32_20, %0 : i32
      %40 = arith.index_cast %39 : i32 to index
      %c0_21 = arith.constant 0 : index
      %c0_22 = arith.constant 0 : index
      %41 = vector.load %arg8[%40, %c0_21, %c0_22] : memref<2x4x256xf32, #tpu.memory_space<vmem>>, vector<1x4x256xf32>
      %42 = vector.shape_cast %41 : vector<1x4x256xf32> to vector<4x256xf32>
      %c0_23 = arith.constant 0 : index
      %c0_24 = arith.constant 0 : index
      %c0_25 = arith.constant 0 : index
      %c0_26 = arith.constant 0 : index
      %43 = vector.load %arg5[%c0_23, %c0_24, %c0_25, %c0_26] : memref<1x1x1x256xf32, #tpu.memory_space<vmem>>, vector<1x1x1x256xf32>
      %44 = vector.shape_cast %43 : vector<1x1x1x256xf32> to vector<1x256xf32>
      %45 = vector.broadcast %44 : vector<1x256xf32> to vector<4x256xf32>
      %46 = arith.mulf %42, %45 : vector<4x256xf32>
      %47 = arith.index_cast %0 : i32 to index
      %c0_27 = arith.constant 0 : index
      %c0_28 = arith.constant 0 : index
      %48 = vector.load %arg8[%47, %c0_27, %c0_28] : memref<2x4x256xf32, #tpu.memory_space<vmem>>, vector<1x4x256xf32>
      %49 = vector.shape_cast %48 : vector<1x4x256xf32> to vector<4x256xf32>
      %cst_29 = arith.constant dense<0.000000e+00> : vector<4x4xf32>
      %50 = tpu.matmul %46, %49, %cst_29 {dimension_numbers = #tpu.dot_dimension_numbers<[1], [1], [0], [0], [0, 0, 1, 0], [], []>} : vector<4x256xf32>, vector<4x256xf32>, vector<4x4xf32> -> vector<4x4xf32>
      %c0_30 = arith.constant 0 : index
      %c0_31 = arith.constant 0 : index
      %c0_32 = arith.constant 0 : index
      %c0_33 = arith.constant 0 : index
      %51 = vector.load %arg7[%c0_30, %c0_31, %c0_32, %c0_33] : memref<1x1x4x4xf32, #tpu.memory_space<vmem>>, vector<1x1x4x4xf32>
      %52 = vector.shape_cast %51 : vector<1x1x4x4xf32> to vector<4x4xf32>
      %53 = vector.shape_cast %50 : vector<4x4xf32> to vector<1x1x4x4xf32>
      tpu.vector_store %arg7[%c0_30, %c0_31, %c0_32, %c0_33], %53 {strides = array<i32>} : memref<1x1x4x4xf32, #tpu.memory_space<vmem>>, vector<1x1x4x4xf32>,
    } else {
    }
    return
  }
  func.func @transform_0(%arg0: i32, %arg1: i32) -> (i32, i32) {
    %c0_i32 = arith.constant 0 : i32
    %c0_i32_0 = arith.constant 0 : i32
    %c0_i32_1 = arith.constant 0 : i32
    return %c0_i32, %c0_i32_0 : i32, i32
  }
  func.func @transform_1(%arg0: i32, %arg1: i32) -> (i32, i32, i32, i32) {
    %c0_i32 = arith.constant 0 : i32
    %c0_i32_0 = arith.constant 0 : i32
    %c0_i32_1 = arith.constant 0 : i32
    return %arg0, %arg1, %c0_i32, %c0_i32_0 : i32, i32, i32, i32
  }
  func.func @transform_2(%arg0: i32, %arg1: i32) -> (i32, i32, i32, i32) {
    %c0_i32 = arith.constant 0 : i32
    %c0_i32_0 = arith.constant 0 : i32
    %c0_i32_1 = arith.constant 0 : i32
    return %arg0, %arg1, %c0_i32, %c0_i32_0 : i32, i32, i32, i32
  }
  func.func @transform_3(%arg0: i32, %arg1: i32) -> (i32, i32, i32, i32) {
    %c1_i32 = arith.constant 1 : i32
    %0 = arith.subi %arg1, %c1_i32 : i32
    %c0_i32 = arith.constant 0 : i32
    %1 = arith.maxsi %0, %c0_i32 : i32
    %c0_i32_0 = arith.constant 0 : i32
    %c0_i32_1 = arith.constant 0 : i32
    %c0_i32_2 = arith.constant 0 : i32
    return %arg0, %1, %c0_i32_0, %c0_i32_1 : i32, i32, i32, i32
  }
  func.func @transform_4(%arg0: i32, %arg1: i32) -> (i32, i32, i32, i32) {
    %c0_i32 = arith.constant 0 : i32
    %c0_i32_0 = arith.constant 0 : i32
    %c0_i32_1 = arith.constant 0 : i32
    return %arg0, %arg1, %c0_i32, %c0_i32_0 : i32, i32, i32, i32
  }
  func.func @transform_5(%arg0: i32, %arg1: i32) -> (i32, i32, i32, i32) {
    %c1_i32 = arith.constant 1 : i32
    %0 = arith.subi %arg1, %c1_i32 : i32
    %c0_i32 = arith.constant 0 : i32
    %1 = arith.maxsi %0, %c0_i32 : i32
    %c0_i32_0 = arith.constant 0 : i32
    %c0_i32_1 = arith.constant 0 : i32
    %c0_i32_2 = arith.constant 0 : i32
    return %arg0, %1, %c0_i32_0, %c0_i32_1 : i32, i32, i32, i32
  }
}

</mosaic_0001>

<llo_original>
// kernel: tpu_custom_call.1
$region0: #{tpu_custom_call.1}
  #allocation0 [shape = 'u32[]', space=smem, size = 0x4, offset = 0x4, fixed_abs, tag = 'smem constant byte address 0x4 - core index']
  #allocation1 [shape = 'u32[144,128]{1,0:T(1,128)}', space=vmem, size = 0x12000, scoped, tag = 'internal scratch']
  #allocation2 [shape = 'f32[2,4,256]{2,1,0:T(4,128)}', space=vmem, size = 0x2000, scoped, tag = 'scratch operand']
  %s0 = inlined_call_operand.vmem [shape: f32[2,256], index: 0, kind: input, shape index: {}]
  %s1 = inlined_call_operand.vmem [shape: f32[2,4,3,3], index: 1, kind: input, shape index: {}]
  %s2 = inlined_call_operand.vmem [shape: f32[2,4,1,256], index: 2, kind: input, shape index: {}]
  %s3 = inlined_call_operand.vmem [shape: f32[2,3,1,256], index: 3, kind: input, shape index: {}]
  %s4 = inlined_call_operand.vmem [shape: f32[2,4,3,256], index: 4, kind: output, shape index: {0}]
  %s5 = inlined_call_operand.hbm [shape: f32[2,3,4,4], index: 5, kind: output, shape index: {1}]
  %6 = xla_tuple %s4, %s5
  %s7 = sld [smem:[#allocation0]]
  $region65: #{tpu_custom_call.1} parent=0
    _
  %s9 = ssub.s32 1, %s7
  %s10 = scalar_select 0, %s9, %s7
  $region1: #{tpu_custom_call.1} parent=0
    #allocation3 [shape = 'u8[4096]{0}', space=vmem, size = 0x1000, scoped, tag = 'output window, operand 1']
    #allocation4 [shape = 's32[2]{0}', space=sflag, size = 0x8, scoped, tag = 'scoped memory for tpu_custom_call.1']
    %11 = vsyncpa [#allocation4], 0
    %s12 = scalar_lea.sflag [#allocation4], 1
    %13 = vsyncpa %s12, 0
    loop: start=0, step=1, limit=10
    $region2: #{tpu_custom_call.1} parent=1 // loop_pre_header
      _
    $region3: #{tpu_custom_call.1} parent=1 // loop_header
      %s15 = sphi 0, %s19
      %p16 = scmp.ge.s32.totalorder %s15, 10
      %s22 = sphi 0, %s34
      %s23 = sphi 0, %s30
      %s24 = sphi 0, %s22
      %s25 = sphi 0, %s23
      %s26 = sphi 0, %s24
      %s27 = sphi 0, %s25
      %s35 = sphi 0, %s35
      %s37 = sphi 0, %s35
      %s38 = sphi 0, %s37
      %s52 = sphi 0, %s38
      %s60 = sphi 0, %s62
      %s63 = sphi 0, %s60
      %s64 = sphi 0, %s63
      %s80 = sphi 0, %s64
      %s88 = sphi 0, %s90
      %s91 = sphi 0, %s88
      %s92 = sphi 0, %s91
      %s108 = sphi 0, %s92
      %s122 = sphi 0, %s124
      %s125 = sphi 0, %s122
      %s126 = sphi 0, %s125
      %s142 = sphi 0, %s126
      %s150 = sphi 0, %s152
      %s153 = sphi 0, %s150
      %s154 = sphi 0, %s153
      %s170 = sphi 0, %s154
      %s184 = sphi 0, %s186
      %s187 = sphi 0, %s184
      %s188 = sphi 0, %s187
      %s204 = sphi 0, %s188
    $region4: #{tpu_custom_call.1} parent=1 // loop_header_branch
      %18 = sbr.rel (%p16) target = $region8
    $region5: #{tpu_custom_call.1} parent=1 // loop_body
      %s20 = ssub.s32 %s15, 1
      %s21 = ssub.s32 %s15, 2
      %s28 = sadd.s32 1, %s23
      %p29 = scmp.ge.s32.totalorder %s28, 4
      %s30 = scalar_select %p29, 0, %s28
      %s31 = sadd.s32 1, %s22
      %s32 = scalar_select %p29, %s31, %s22
      %p33 = scmp.ge.s32.totalorder %s32, 2
      %s34 = scalar_select %p33, 0, %s32
      %s36 = sadd.s32 %s35, 1
      %p39 = scmp.eq.s32.totalorder %s15, 7
      %p40 = scmp.ne.s32.totalorder %s35, %s37
      %p41 = scmp.eq.s32.totalorder %s15, 0
      %p42 = por %p40, %p41
      %p43 = scmp.ne.s32.totalorder %s35, %s37
      %p44 = scmp.eq.s32.totalorder %s20, 7
      %p45 = por %p43, %p44
      %p46 = scmp.ne.s32.totalorder %s37, %s38
      %p47 = scmp.eq.s32.totalorder %s20, 0
      %p48 = por %p46, %p47
      %p49 = scmp.ne.s32.totalorder %s37, %s38
      %p50 = scmp.eq.s32.totalorder %s21, 7
      %p51 = por %p49, %p50
      %p53 = scmp.ne.s32.totalorder %s38, %s52
      %p54 = scmp.eq.s32.totalorder %s21, 0
      %p55 = por %p53, %p54
      %s56 = ssub.s32 %s22, %s34
      %s57 = ssub.s32 %s23, %s30
      %s58 = sor.u32 %s56, %s57
      %p59 = scmp.eq.s32.totalorder %s58, 0
      %s61 = sadd.s32 %s60, 1
      %s62 = scalar_select %p59, %s60, %s61
      %p65 = pneg %p59
      %p66 = scmp.eq.s32.totalorder %s15, 7
      %p67 = por %p65, %p66
      %p68 = scmp.ne.s32.totalorder %s60, %s63
      %p69 = scmp.eq.s32.totalorder %s15, 0
      %p70 = por %p68, %p69
      %p71 = scmp.ne.s32.totalorder %s60, %s63
      %p72 = scmp.eq.s32.totalorder %s20, 7
      %p73 = por %p71, %p72
      %p74 = scmp.ne.s32.totalorder %s63, %s64
      %p75 = scmp.eq.s32.totalorder %s20, 0
      %p76 = por %p74, %p75
      %p77 = scmp.ne.s32.totalorder %s63, %s64
      %p78 = scmp.eq.s32.totalorder %s21, 7
      %p79 = por %p77, %p78
      %p81 = scmp.ne.s32.totalorder %s64, %s80
      %p82 = scmp.eq.s32.totalorder %s21, 0
      %p83 = por %p81, %p82
      %s84 = ssub.s32 %s22, %s34
      %s85 = ssub.s32 %s23, %s30
      %s86 = sor.u32 %s84, %s85
      %p87 = scmp.eq.s32.totalorder %s86, 0
      %s89 = sadd.s32 %s88, 1
      %s90 = scalar_select %p87, %s88, %s89
      %p93 = pneg %p87
      %p94 = scmp.eq.s32.totalorder %s15, 7
      %p95 = por %p93, %p94
      %p96 = scmp.ne.s32.totalorder %s88, %s91
      %p97 = scmp.eq.s32.totalorder %s15, 0
      %p98 = por %p96, %p97
      %p99 = scmp.ne.s32.totalorder %s88, %s91
      %p100 = scmp.eq.s32.totalorder %s20, 7
      %p101 = por %p99, %p100
      %p102 = scmp.ne.s32.totalorder %s91, %s92
      %p103 = scmp.eq.s32.totalorder %s20, 0
      %p104 = por %p102, %p103
      %p105 = scmp.ne.s32.totalorder %s91, %s92
      %p106 = scmp.eq.s32.totalorder %s21, 7
      %p107 = por %p105, %p106
      %p109 = scmp.ne.s32.totalorder %s92, %s108
      %p110 = scmp.eq.s32.totalorder %s21, 0
      %p111 = por %p109, %p110
      %s112 = ssub.s32 %s23, 1
      %p113 = scmp.gt.s32.totalorder %s112, 0
      %s114 = scalar_select %p113, %s112, 0
      %s115 = ssub.s32 %s30, 1
      %p116 = scmp.gt.s32.totalorder %s115, 0
      %s117 = scalar_select %p116, %s115, 0
      %s118 = ssub.s32 %s22, %s34
      %s119 = ssub.s32 %s114, %s117
      %s120 = sor.u32 %s118, %s119
      %p121 = scmp.eq.s32.totalorder %s120, 0
      %s123 = sadd.s32 %s122, 1
      %s124 = scalar_select %p121, %s122, %s123
      %p127 = pneg %p121
      %p128 = scmp.eq.s32.totalorder %s15, 7
      %p129 = por %p127, %p128
      %p130 = scmp.ne.s32.totalorder %s122, %s125
      %p131 = scmp.eq.s32.totalorder %s15, 0
      %p132 = por %p130, %p131
      %p133 = scmp.ne.s32.totalorder %s122, %s125
      %p134 = scmp.eq.s32.totalorder %s20, 7
      %p135 = por %p133, %p134
      %p136 = scmp.ne.s32.totalorder %s125, %s126
      %p137 = scmp.eq.s32.totalorder %s20, 0
      %p138 = por %p136, %p137
      %p139 = scmp.ne.s32.totalorder %s125, %s126
      %p140 = scmp.eq.s32.totalorder %s21, 7
      %p141 = por %p139, %p140
      %p143 = scmp.ne.s32.totalorder %s126, %s142
      %p144 = scmp.eq.s32.totalorder %s21, 0
      %p145 = por %p143, %p144
      %s146 = ssub.s32 %s22, %s34
      %s147 = ssub.s32 %s23, %s30
      %s148 = sor.u32 %s146, %s147
      %p149 = scmp.eq.s32.totalorder %s148, 0
      %s151 = sadd.s32 %s150, 1
      %s152 = scalar_select %p149, %s150, %s151
      %p155 = pneg %p149
      %p156 = scmp.eq.s32.totalorder %s15, 7
      %p157 = por %p155, %p156
      %p158 = scmp.ne.s32.totalorder %s150, %s153
      %p159 = scmp.eq.s32.totalorder %s15, 0
      %p160 = por %p158, %p159
      %p161 = scmp.ne.s32.totalorder %s150, %s153
      %p162 = scmp.eq.s32.totalorder %s20, 7
      %p163 = por %p161, %p162
      %p164 = scmp.ne.s32.totalorder %s153, %s154
      %p165 = scmp.eq.s32.totalorder %s20, 0
      %p166 = por %p164, %p165
      %p167 = scmp.ne.s32.totalorder %s153, %s154
      %p168 = scmp.eq.s32.totalorder %s21, 7
      %p169 = por %p167, %p168
      %p171 = scmp.ne.s32.totalorder %s154, %s170
      %p172 = scmp.eq.s32.totalorder %s21, 0
      %p173 = por %p171, %p172
      %s174 = ssub.s32 %s23, 1
      %p175 = scmp.gt.s32.totalorder %s174, 0
      %s176 = scalar_select %p175, %s174, 0
      %s177 = ssub.s32 %s30, 1
      %p178 = scmp.gt.s32.totalorder %s177, 0
      %s179 = scalar_select %p178, %s177, 0
      %s180 = ssub.s32 %s22, %s34
      %s181 = ssub.s32 %s176, %s179
      %s182 = sor.u32 %s180, %s181
      %p183 = scmp.eq.s32.totalorder %s182, 0
      %s185 = sadd.s32 %s184, 1
      %s186 = scalar_select %p183, %s184, %s185
      %p189 = pneg %p183
      %p190 = scmp.eq.s32.totalorder %s15, 7
      %p191 = por %p189, %p190
      %p192 = scmp.ne.s32.totalorder %s184, %s187
      %p193 = scmp.eq.s32.totalorder %s15, 0
      %p194 = por %p192, %p193
      %p195 = scmp.ne.s32.totalorder %s184, %s187
      %p196 = scmp.eq.s32.totalorder %s20, 7
      %p197 = por %p195, %p196
      %p198 = scmp.ne.s32.totalorder %s187, %s188
      %p199 = scmp.eq.s32.totalorder %s20, 0
      %p200 = por %p198, %p199
      %p201 = scmp.ne.s32.totalorder %s187, %s188
      %p202 = scmp.eq.s32.totalorder %s21, 7
      %p203 = por %p201, %p202
      %p205 = scmp.ne.s32.totalorder %s188, %s204
      %p206 = scmp.eq.s32.totalorder %s21, 0
      %p207 = por %p205, %p206
      %p208 = scmp.le.s32.totalorder 1, %s15
      %p209 = scmp.lt.s32.totalorder %s15, 9
      %p210 = pnand %p208, %p209
      %p211 = pneg %p210
      // Predicated region
      $region9: #{tpu_custom_call.1} parent=5 // pred_check
        _
      $region10: #{tpu_custom_call.1} parent=5 // pred_check_branch
        %213 = sbr.rel (%p210) target = $region12
      $region11: #{tpu_custom_call.1} parent=5 // pred_region
        %s214 = ssub.s32 %s15, 1
        // Predicated region
        $region13: #{tpu_custom_call.1} parent=11 // pred_check
          %p215 = pneg %p48
        $region14: #{tpu_custom_call.1} parent=11 // pred_check_branch
          %217 = sbr.rel (%p215) target = $region16
        $region15: #{tpu_custom_call.1} parent=11 // pred_region
          _
        $region16: #{tpu_custom_call.1} parent=11 // pred_fallthru
          _
      $region12: #{tpu_custom_call.1} parent=5 // pred_fallthru
        _
      %p218 = scmp.lt.s32.totalorder %s15, 8
      // Predicated region
      $region17: #{tpu_custom_call.1} parent=5 // pred_check
        %p219 = pneg %p218
      $region18: #{tpu_custom_call.1} parent=5 // pred_check_branch
        %221 = sbr.rel (%p219) target = $region20
      $region19: #{tpu_custom_call.1} parent=5 // pred_region
        // Predicated region
        $region21: #{tpu_custom_call.1} parent=19 // pred_check
          %p222 = pneg %p70
        $region22: #{tpu_custom_call.1} parent=19 // pred_check_branch
          %224 = sbr.rel (%p222) target = $region24
        $region23: #{tpu_custom_call.1} parent=19 // pred_region
          %p225 = scmp.lt.s32.totalorder %s22, 1
          %s226 = scalar_select %p225, %s22, 1
          %p227 = scmp.lt.s32.totalorder %s23, 3
          %s228 = scalar_select %p227, %s23, 3
          %s229 = smul.addr %s226, 4
          %s230 = sadd.s32 %s228, %s229
          %s231 = smul.addr %s230, 4
          %s232 = scalar_lea.vmem %s1, %s231
        $region24: #{tpu_custom_call.1} parent=19 // pred_fallthru
          _
        // Predicated region
        $region25: #{tpu_custom_call.1} parent=19 // pred_check
          %p233 = pneg %p98
        $region26: #{tpu_custom_call.1} parent=19 // pred_check_branch
          %235 = sbr.rel (%p233) target = $region28
        $region27: #{tpu_custom_call.1} parent=19 // pred_region
          %p236 = scmp.lt.s32.totalorder %s22, 1
          %s237 = scalar_select %p236, %s22, 1
          %p238 = scmp.lt.s32.totalorder %s23, 3
          %s239 = scalar_select %p238, %s23, 3
          %s240 = smul.addr %s239, 2
          %s241 = smul.addr %s237, 8
          %s242 = sadd.s32 %s240, %s241
          %s243 = scalar_lea.vmem %s2, %s242
        $region28: #{tpu_custom_call.1} parent=19 // pred_fallthru
          _
        // Predicated region
        $region29: #{tpu_custom_call.1} parent=19 // pred_check
          %p244 = pneg %p132
        $region30: #{tpu_custom_call.1} parent=19 // pred_check_branch
          %246 = sbr.rel (%p244) target = $region32
        $region31: #{tpu_custom_call.1} parent=19 // pred_region
          %s247 = ssub.s32 %s23, 1
          %p248 = scmp.gt.s32.totalorder %s247, 0
          %s249 = scalar_select %p248, %s247, 0
          %p250 = scmp.lt.s32.totalorder %s22, 1
          %s251 = scalar_select %p250, %s22, 1
          %p252 = scmp.lt.s32.totalorder %s249, 2
          %s253 = scalar_select %p252, %s249, 2
          %s254 = smul.addr %s253, 2
          %s255 = smul.addr %s251, 6
          %s256 = sadd.s32 %s254, %s255
          %s257 = scalar_lea.vmem %s3, %s256
          %s258 = ssub.s32 %s23, 1
          %p259 = scmp.gt.s32.totalorder %s258, 0
          %s260 = scalar_select %p259, %s258, 0
        $region32: #{tpu_custom_call.1} parent=19 // pred_fallthru
          _
      $region20: #{tpu_custom_call.1} parent=5 // pred_fallthru
        _
      %p261 = scmp.le.s32.totalorder 1, %s15
      %p262 = scmp.lt.s32.totalorder %s15, 9
      %p263 = pnand %p261, %p262
      %p264 = pneg %p263
      // Predicated region
      $region33: #{tpu_custom_call.1} parent=5 // pred_check
        _
      $region34: #{tpu_custom_call.1} parent=5 // pred_check_branch
        %266 = sbr.rel (%p263) target = $region36
      $region35: #{tpu_custom_call.1} parent=5 // pred_region
        %s267 = ssub.s32 %s15, 1
        %p268 = pneg %p48
        %p269 = pneg %p45
        %p270 = scmp.lt.s32.totalorder %s24, 1
        %s271 = scalar_select %p270, %s24, 1
        %p272 = scmp.lt.s32.totalorder %s25, 3
        %s273 = scalar_select %p272, %s25, 3
        %s274 = smul.addr %s271, 4
        %s275 = sadd.s32 %s273, %s274
        %s276 = smul.addr %s275, 4
        %s277 = scalar_lea.vmem %s1, %s276
        %p278 = pneg %p76
        %p279 = pneg %p73
        %p280 = scmp.lt.s32.totalorder %s24, 1
        %s281 = scalar_select %p280, %s24, 1
        %p282 = scmp.lt.s32.totalorder %s25, 3
        %s283 = scalar_select %p282, %s25, 3
        %s284 = smul.addr %s283, 2
        %s285 = smul.addr %s281, 8
        %s286 = sadd.s32 %s284, %s285
        %s287 = scalar_lea.vmem %s2, %s286
        %p288 = pneg %p104
        %p289 = pneg %p101
        %s290 = ssub.s32 %s25, 1
        %p291 = scmp.gt.s32.totalorder %s290, 0
        %s292 = scalar_select %p291, %s290, 0
        %p293 = scmp.lt.s32.totalorder %s24, 1
        %s294 = scalar_select %p293, %s24, 1
        %p295 = scmp.lt.s32.totalorder %s292, 2
        %s296 = scalar_select %p295, %s292, 2
        %s297 = smul.addr %s296, 2
        %s298 = smul.addr %s294, 6
        %s299 = sadd.s32 %s297, %s298
        %s300 = scalar_lea.vmem %s3, %s299
        %p301 = pneg %p138
        %p302 = pneg %p135
        %p303 = pneg %p166
        %p304 = pneg %p163
        %p305 = scmp.lt.s32.totalorder %s24, 1
        %s306 = scalar_select %p305, %s24, 1
        %p307 = scmp.lt.s32.totalorder %s25, 3
        %s308 = scalar_select %p307, %s25, 3
        %s309 = smul.addr %s308, 2
        %s310 = smul.addr %s306, 8
        %s311 = sadd.s32 %s309, %s310
        %s312 = smul.addr %s311, 4
        %s313 = scalar_lea.vmem %s4, %s312
        %p314 = pneg %p200
        %p315 = pneg %p197
        %s316 = sand.u32 %s187, 1
        %s317 = scalar_lea.sflag [#allocation4], %s316
        %s318 = sand.u32 %s187, 1
        %s319 = smul.addr %s318, 4
        %s320 = scalar_lea.vmem [#allocation3], %s319
        %p321 = scmp.lt.s32.totalorder %s24, 1
        %s322 = scalar_select %p321, %s24, 1
        %p323 = scmp.lt.s32.totalorder %s25, 3
        %s324 = scalar_select %p323, %s25, 3
        %s325 = smul.addr %s322, 4
        %s326 = sadd.s32 %s324, %s325
        %s327 = smul.addr %s326, 4
        %s328 = scalar_lea.vmem %s1, %s327
        %p329 = scmp.lt.s32.totalorder %s24, 1
        %s330 = scalar_select %p329, %s24, 1
        %p331 = scmp.lt.s32.totalorder %s25, 3
        %s332 = scalar_select %p331, %s25, 3
        %s333 = smul.addr %s332, 2
        %s334 = smul.addr %s330, 8
        %s335 = sadd.s32 %s333, %s334
        %s336 = scalar_lea.vmem %s2, %s335
        %s337 = ssub.s32 %s25, 1
        %p338 = scmp.gt.s32.totalorder %s337, 0
        %s339 = scalar_select %p338, %s337, 0
        %p340 = scmp.lt.s32.totalorder %s24, 1
        %s341 = scalar_select %p340, %s24, 1
        %p342 = scmp.lt.s32.totalorder %s339, 2
        %s343 = scalar_select %p342, %s339, 2
        %s344 = smul.addr %s343, 2
        %s345 = smul.addr %s341, 6
        %s346 = sadd.s32 %s344, %s345
        %s347 = scalar_lea.vmem %s3, %s346
        %s348 = ssub.s32 %s25, 1
        %p349 = scmp.gt.s32.totalorder %s348, 0
        %s350 = scalar_select %p349, %s348, 0
        %p351 = scmp.lt.s32.totalorder %s24, 1
        %s352 = scalar_select %p351, %s24, 1
        %p353 = scmp.lt.s32.totalorder %s25, 3
        %s354 = scalar_select %p353, %s25, 3
        %s355 = smul.addr %s354, 2
        %s356 = smul.addr %s352, 8
        %s357 = sadd.s32 %s355, %s356
        %s358 = smul.addr %s357, 4
        %s359 = scalar_lea.vmem %s4, %s358
        %s360 = ssub.s32 %s25, 1
        %p361 = scmp.gt.s32.totalorder %s360, 0
        %s362 = scalar_select %p361, %s360, 0
        %s363 = sand.u32 %s25, 1
        %v364 = vld [vmem:[%s0] ss:$2 sm:$0x3]
        %s365 = scalar_lea.vmem %s0, 1
        %v366 = vld [vmem:[%s365] ss:$2 sm:$0x3]
        %v367 = vld [vmem:[%s336] sm:$0x3]
        %v368 = vld [vmem:[%s328] sm:$0x7]
        %370 = vset.pattern.permute.xlu0 0
        %371 = vperm.xlu0 %370, %v368
        %v372 = vpop.permute.xlu0 %371
        %v375 = vlaneseq
        %v376 = vshrl.u32 %v375, 7
        %v377 = vsub.s32 0, %v376
        %v378 = vrot.slane %v364, %v377
        %v379 = vlaneseq
        %v380 = vshrl.u32 %v379, 7
        %v381 = vsub.s32 1, %v380
        %v382 = vrot.slane %v364, %v381
        %v385 = vmul.f32 %v372, %v378
        %v386 = vmul.f32 %v372, %v382
        %387 = vset.pattern.permute.xlu0 1
        %388 = vperm.xlu0 %387, %v368
        %v389 = vpop.permute.xlu0 %388
        %v392 = vlaneseq
        %v393 = vshrl.u32 %v392, 7
        %v394 = vsub.s32 0, %v393
        %v395 = vrot.slane %v366, %v394
        %v396 = vlaneseq
        %v397 = vshrl.u32 %v396, 7
        %v398 = vsub.s32 1, %v397
        %v399 = vrot.slane %v366, %v398
        %v402 = vmul.f32 %v389, %v395
        %v403 = vmul.f32 %v389, %v399
        %v404 = vadd.f32 %v385, %v402
        %v405 = vadd.f32 %v386, %v403
        %406 = vset.pattern.permute.xlu0 2
        %407 = vperm.xlu0 %406, %v368
        %v408 = vpop.permute.xlu0 %407
        %v410 = vadd.f32 %v404, %v408
        %v411 = vadd.f32 %v405, %v408
        %v413 = vlaneseq
        %v414 = vshrl.u32 %v413, 7
        %v415 = vsub.s32 0, %v414
        %v416 = vrot.slane %v367, %v415
        %v417 = vlaneseq
        %v418 = vshrl.u32 %v417, 7
        %v419 = vsub.s32 1, %v418
        %v420 = vrot.slane %v367, %v419
        %v423 = vmul.f32 %v410, %v416
        %v424 = vmul.f32 %v411, %v420
        %v427 = vcombine.low %v423, %v424
        %429 = vst [vmem:[%s359] sm:$0x77] %v427
        %s430 = smul.u32 %s363, 2
        %s431 = smul.addr %s430, 4
        %s432 = scalar_lea.vmem [#allocation2], %s431
        %433 = vst [vmem:[%s432] sm:$0x77] %v427
        %v434 = vlaneseq
        %vm435 = vcmp.ge.s32.totalorder %v434, 0
        %vm436 = vcmp.lt.s32.totalorder %v434, 256
        %vm437 = vmand %vm435, %vm436
        %s438 = scalar_lea.vmem %s432, 3 [#allocation2]
        %439 = vst.msk [vmem:[%s438] ss:$4 sm:$0x3] %vm437, 1.0
        %p440 = scmp.eq.s32.totalorder %s25, 0
        // Predicated region
        $region37: #{tpu_custom_call.1} parent=35 // pred_check
          %p441 = pneg %p440
        $region38: #{tpu_custom_call.1} parent=35 // pred_check_branch
          %443 = sbr.rel (%p441) target = $region40
        $region39: #{tpu_custom_call.1} parent=35 // pred_region
          %vm444 = vcmask 27648
          %445 = vst.msk [vmem:[%s320] sm:$0xf] %vm444, 0.0
        $region40: #{tpu_custom_call.1} parent=35 // pred_fallthru
          _
        %p446 = scmp.gt.s32.totalorder %s25, 0
        // Predicated region
        $region41: #{tpu_custom_call.1} parent=35 // pred_check
          %p447 = pneg %p446
        $region42: #{tpu_custom_call.1} parent=35 // pred_check_branch
          %449 = sbr.rel (%p447) target = $region44
        $region43: #{tpu_custom_call.1} parent=35 // pred_region
          %s450 = ssub.s32 1, %s363
          %s451 = smul.u32 %s450, 2
          %s452 = smul.addr %s451, 4
          %s453 = scalar_lea.vmem [#allocation2], %s452
          %v454 = vld [vmem:[%s453] sm:$0xff]
          %v455 = vld [vmem:[%s347] sm:$0x3]
          %v457 = vlaneseq
          %v458 = vshrl.u32 %v457, 7
          %v459 = vsub.s32 0, %v458
          %v460 = vrot.slane %v455, %v459
          %v461 = vlaneseq
          %v462 = vshrl.u32 %v461, 7
          %v463 = vsub.s32 1, %v462
          %v464 = vrot.slane %v455, %v463
          %v465 = vcombine.low %v460, %v464
          %v467 = vmul.f32 %v454, %v465
          %v468 = vld [vmem:[%s432] sm:$0xff]
          %v470 = vcombine.high %v467, %v467
          %v473 = vcombine.high %v468, %v468
          %475 = vmatprep.subr.mxu0 0.0
          %476 = vmatpush1.xpose.msra.mxu0 0.0
          %477 = vmatprep.subr.mxu0 0.0
          %478 = vmatpush1.xpose.msra.mxu0 0.0
          %479 = vmatprep.subr.mxu0 0.0
          %480 = vmatpush1.xpose.msra.mxu0 0.0
          %481 = vmatprep.subr.mxu0 0.0
          %482 = vmatpush1.xpose.msra.mxu0 0.0
          %483 = vmatprep.subr.mxu0 0.0
          %484 = vmatpush1.xpose.msra.mxu0 0.0
          %485 = vmatprep.subr.mxu0 0.0
          %486 = vmatpush1.xpose.msra.mxu0 0.0
          %487 = vmatprep.subr.mxu0 0.0
          %488 = vmatpush1.xpose.msra.mxu0 0.0
          %489 = vmatprep.subr.mxu0 0.0
          %490 = vmatpush1.xpose.msra.mxu0 0.0
          %491 = vmatprep.subr.mxu0 0.0
          %492 = vmatpush1.xpose.msra.mxu0 0.0
          %493 = vmatprep.subr.mxu0 0.0
          %494 = vmatpush1.xpose.msra.mxu0 0.0
          %495 = vmatprep.subr.mxu0 0.0
          %496 = vmatpush1.xpose.msra.mxu0 0.0
          %497 = vmatprep.subr.mxu0 0.0
          %498 = vmatpush1.xpose.msra.mxu0 0.0
          %499 = vmatprep.subr.mxu0 0.0
          %500 = vmatpush1.xpose.msra.mxu0 0.0
          %501 = vmatprep.subr.mxu0 0.0
          %502 = vmatpush1.xpose.msra.mxu0 0.0
          %503 = vmatprep.subr.mxu0 0.0
          %504 = vmatpush1.xpose.msra.mxu0 0.0
          %505 = vmatprep.subr.mxu0 %v473
          %506 = vmatpush1.xpose.msra.mxu0 %v468
          %507 = vmatprep.subr.mxu0 0.0
          %508 = vmatpush2.xpose.msra.mxu0 0.0
          %509 = vmatprep.subr.mxu0 0.0
          %510 = vmatpush2.xpose.msra.mxu0 0.0
          %511 = vmatprep.subr.mxu0 0.0
          %512 = vmatpush2.xpose.msra.mxu0 0.0
          %513 = vmatprep.subr.mxu0 0.0
          %514 = vmatpush2.xpose.msra.mxu0 0.0
          %515 = vmatprep.subr.mxu0 0.0
          %516 = vmatpush2.xpose.msra.mxu0 0.0
          %517 = vmatprep.subr.mxu0 0.0
          %518 = vmatpush2.xpose.msra.mxu0 0.0
          %519 = vmatprep.subr.mxu0 0.0
          %520 = vmatpush2.xpose.msra.mxu0 0.0
          %521 = vmatprep.subr.mxu0 0.0
          %522 = vmatpush2.xpose.msra.mxu0 0.0
          %523 = vmatprep.subr.mxu0 0.0
          %524 = vmatpush2.xpose.msra.mxu0 0.0
          %525 = vmatprep.subr.mxu0 0.0
          %526 = vmatpush2.xpose.msra.mxu0 0.0
          %527 = vmatprep.subr.mxu0 0.0
          %528 = vmatpush2.xpose.msra.mxu0 0.0
          %529 = vmatprep.subr.mxu0 0.0
          %530 = vmatpush2.xpose.msra.mxu0 0.0
          %531 = vmatprep.subr.mxu0 0.0
          %532 = vmatpush2.xpose.msra.mxu0 0.0
          %533 = vmatprep.subr.mxu0 0.0
          %534 = vmatpush2.xpose.msra.mxu0 0.0
          %535 = vmatprep.subr.mxu0 0.0
          %536 = vmatpush2.xpose.msra.mxu0 0.0
          %537 = vmatprep.subr.mxu0 0.0
          %538 = vmatpush2.xpose.msra.mxu0 0.0
          %539 = vmatprep.mubr.f32.mxu0 %v470
          %540 = vmatmul.mubr.f32.gmra.mxu0 %v467
          %v541 = vpop.f32.mrf.mxu0
          %v542 = vadd.f32 0.0, %v541
          %v543 = vpop.f32.mrf.mxu0
          %544 = vdwg.mxu0
          %vm545 = vcmask 27648
          %546 = vst.msk [vmem:[%s320] sm:$0xf] %vm545, %v542
        $region44: #{tpu_custom_call.1} parent=35 // pred_fallthru
          _
        %p547 = scmp.lt.s32.totalorder %s24, 1
        %s548 = scalar_select %p547, %s24, 1
        %p549 = scmp.lt.s32.totalorder %s25, 3
        %s550 = scalar_select %p549, %s25, 3
        %s551 = smul.addr %s550, 2
        %s552 = smul.addr %s548, 8
        %s553 = sadd.s32 %s551, %s552
        %s554 = smul.addr %s553, 4
        %s555 = scalar_lea.vmem %s4, %s554
        %s556 = sand.u32 %s187, 1
        %s557 = scalar_lea.sflag [#allocation4], %s556
        %s558 = sand.u32 %s187, 1
        %s559 = smul.addr %s558, 4
        %s560 = scalar_lea.vmem [#allocation3], %s559
        // Predicated region
        $region45: #{tpu_custom_call.1} parent=35 // pred_check
          %p561 = pneg %p163
        $region46: #{tpu_custom_call.1} parent=35 // pred_check_branch
          %563 = sbr.rel (%p561) target = $region48
        $region47: #{tpu_custom_call.1} parent=35 // pred_region
          _
        $region48: #{tpu_custom_call.1} parent=35 // pred_fallthru
          _
        // Predicated region
        $region49: #{tpu_custom_call.1} parent=35 // pred_check
          %p564 = pneg %p197
        $region50: #{tpu_custom_call.1} parent=35 // pred_check_branch
          %566 = sbr.rel (%p564) target = $region52
        $region51: #{tpu_custom_call.1} parent=35 // pred_region
          %s567 = ssub.s32 %s25, 1
          %p568 = scmp.gt.s32.totalorder %s567, 0
          %s569 = scalar_select %p568, %s567, 0
          %s571 = ssub.s32 64, 64
          %572 = vsyncadd %s557, %s571
          %s573 = smul.addr %s24, 3
          %s574 = sadd.s32 %s569, %s573
          %s575 = smul.addr %s574, 64
          %s576 = scalar_lea.hbm %s5, %s575
          %s578 = sshll.u32 %s560, 4
          %s579 = int_to_ptr.vmem [resolvable:$true] %s578
          %581 = dma.vmem_to_hbm [thread:$0]  %s579, 64, %s576, %s557
        $region52: #{tpu_custom_call.1} parent=35 // pred_fallthru
          _
      $region36: #{tpu_custom_call.1} parent=5 // pred_fallthru
        _
      %p582 = scmp.le.s32.totalorder 2, %s15
      // Predicated region
      $region53: #{tpu_custom_call.1} parent=5 // pred_check
        %p583 = pneg %p582
      $region54: #{tpu_custom_call.1} parent=5 // pred_check_branch
        %585 = sbr.rel (%p583) target = $region56
      $region55: #{tpu_custom_call.1} parent=5 // pred_region
        %s586 = ssub.s32 %s15, 2
        // Predicated region
        $region57: #{tpu_custom_call.1} parent=55 // pred_check
          %p587 = pneg %p169
        $region58: #{tpu_custom_call.1} parent=55 // pred_check_branch
          %589 = sbr.rel (%p587) target = $region60
        $region59: #{tpu_custom_call.1} parent=55 // pred_region
          %p590 = scmp.lt.s32.totalorder %s26, 1
          %s591 = scalar_select %p590, %s26, 1
          %p592 = scmp.lt.s32.totalorder %s27, 3
          %s593 = scalar_select %p592, %s27, 3
          %s594 = smul.addr %s593, 2
          %s595 = smul.addr %s591, 8
          %s596 = sadd.s32 %s594, %s595
          %s597 = smul.addr %s596, 4
          %s598 = scalar_lea.vmem %s4, %s597
        $region60: #{tpu_custom_call.1} parent=55 // pred_fallthru
          _
        // Predicated region
        $region61: #{tpu_custom_call.1} parent=55 // pred_check
          %p599 = pneg %p203
        $region62: #{tpu_custom_call.1} parent=55 // pred_check_branch
          %601 = sbr.rel (%p599) target = $region64
        $region63: #{tpu_custom_call.1} parent=55 // pred_region
          %s602 = sand.u32 %s188, 1
          %s603 = scalar_lea.sflag [#allocation4], %s602
          %s604 = sand.u32 %s188, 1
          %s605 = smul.addr %s604, 4
          %s606 = scalar_lea.vmem [#allocation3], %s605
          %607 = dma.done %s603, 64
        $region64: #{tpu_custom_call.1} parent=55 // pred_fallthru
          _
      $region56: #{tpu_custom_call.1} parent=5 // pred_fallthru
        _
    $region6: #{tpu_custom_call.1} parent=1 // loop_footer
      %s19 = sadd.s32 1, %s15
    $region7: #{tpu_custom_call.1} parent=1 // loop_footer_branch
      %14 = sbr.rel target = $region3
    $region8: #{tpu_custom_call.1} parent=1 // loop_exit
      _
    %608 = vsyncpa [#allocation4], 1
    %s609 = scalar_lea.sflag [#allocation4], 1
    %610 = vsyncpa %s609, 1

</llo_original>
